<compile_context>
chip_gen: v6e
topology: v6e:2x2x1
jax: 0.10.0
libtpu: 0.0.40
codegen_flags: <defaults>
</compile_context>

<pallas_src>
import jax
import jax.numpy as jnp
from jax.experimental import pallas as pl
from jax.experimental.pallas import tpu as pltpu


def _merge_slice_kernel(x_ref, o_ref):
    # x_ref: (br, 2H) full-width tile, o_ref: (br, H).
    # When H % 128 == 0 the slice is lane-aligned (pure vreg selection);
    # otherwise (toy shapes only) it costs a cross-lane shift -- acceptable.
    half = o_ref.shape[-1]
    o_ref[...] = x_ref[:, :half] + x_ref[:, half:]


def _merge_split_kernel(a_ref, b_ref, o_ref):
    # a_ref, b_ref, o_ref: (br, hc) tiles; pure full-tile VPU add.
    o_ref[...] = a_ref[...] + b_ref[...]


def _vmem_budget_and_limit():
    """Generation-aware VMEM working-set budget and scoped limit."""
    try:
        vmem_cap = int(pltpu.get_tpu_info().vmem_capacity_bytes)
    except Exception:
        vmem_cap = 64 << 20  # conservative fallback (v7x per-TC VMEM)
    if vmem_cap >= (128 << 20):          # v5e / v6e
        budget = vmem_cap // 2           # ~64 MiB
        limit = (vmem_cap * 3) // 4      # ~96 MiB
    else:                                # v7x (64 MiB per TensorCore)
        budget = (vmem_cap * 2) // 5     # ~25.6 MiB
        limit = (vmem_cap * 5) // 8      # ~40 MiB
    return budget, limit


def _merge_2d(x2d):
    rows, width = x2d.shape
    assert width % 2 == 0, "last dimension must be even"
    half = width // 2
    itemsize = jnp.dtype(x2d.dtype).itemsize

    # Sublane packing granularity: 8 rows f32, 16 bf16, 32 int8/fp8.
    sub = max(8, 32 // itemsize)

    budget, vmem_limit = _vmem_budget_and_limit()

    # Split-BlockSpec path only when each half row is already a multi-KiB
    # contiguous chunk; otherwise a single contiguous full-width load wins.
    use_split = (half % 128 == 0) and (half * itemsize >= 2048)

    # Column (lane) tiling for very wide embeddings: only on the split path,
    # when even a minimal `sub`-row full-width block would exceed the budget.
    hc = half
    if use_split and 6 * sub * half * itemsize > budget:
        m = half // 128
        max_d = max(1, min(m, budget // (6 * sub * 128 * itemsize)))
        d = 1
        for cand in range(max_d, 0, -1):
            if m % cand == 0:          # hc must divide half so the second
                d = cand               # half's block index (half//hc + j)
                break                  # stays integral.
        hc = 128 * d
    # TODO(synk): unaligned (H % 128 != 0) inputs with enormous H would need
    # wrapper-side padding to enable column tiling; not needed for this model.

    # Row tile purely from the budget (double-buffered: 2*(2H_in + H_out)).
    # No artificial cap -- per-grid-step overhead dominates small blocks.
    tr = budget // (6 * max(hc, 1) * itemsize)
    tr = max(sub, (tr // sub) * sub)

    total_bytes = rows * width * itemsize
    if rows <= tr:
        # v7x megacore: keep >= 2 (here ~4) parallel row blocks for mid-size
        # inputs so both TensorCores participate; tiny inputs stay 1 block.
        if total_bytes >= (4 << 20) and rows >= 4 * sub:
            br = ((pl.cdiv(rows, 4) + sub - 1) // sub) * sub
        else:
            br = rows                  # full-extent block (satisfies (8,128))
    else:
        br = tr                        # multiple of `sub`; edge block clipped
    grid_rows = pl.cdiv(rows, br)

    out_shape = jax.ShapeDtypeStruct((rows, half), x2d.dtype)
    cost = pl.CostEstimate(
        flops=rows * half,
        transcendentals=0,
        bytes_accessed=3 * rows * half * itemsize,
    )

    if use_split:
        grid_cols = pl.cdiv(half, hc)
        off = half // hc               # second half starts at column block off
        compiler_params = pltpu.CompilerParams(
            dimension_semantics=("parallel", "parallel"),
            vmem_limit_bytes=vmem_limit,
        )
        return pl.pallas_call(
            _merge_split_kernel,
            out_shape=out_shape,
            grid=(grid_rows, grid_cols),
            in_specs=[
                pl.BlockSpec((br, hc), lambda i, j: (i, j)),
                pl.BlockSpec((br, hc), lambda i, j, off=off: (i, j + off)),
            ],
            out_specs=pl.BlockSpec((br, hc), lambda i, j: (i, j)),
            compiler_params=compiler_params,
            cost_estimate=cost,
        )(x2d, x2d)
    else:
        compiler_params = pltpu.CompilerParams(
            dimension_semantics=("parallel",),
            vmem_limit_bytes=vmem_limit,
        )
        return pl.pallas_call(
            _merge_slice_kernel,
            out_shape=out_shape,
            grid=(grid_rows,),
            in_specs=[pl.BlockSpec((br, width), lambda i: (i, 0))],
            out_specs=pl.BlockSpec((br, half), lambda i: (i, 0)),
            compiler_params=compiler_params,
            cost_estimate=cost,
        )(x2d)


def merge_layer(x):
    """JAX/Pallas equivalent of MergeLayer.forward."""
    if isinstance(x, tuple):
        x = x[0]
    x = jnp.asarray(x)
    if x.ndim == 1:
        e = x.shape[0]
        out = _merge_2d(x.reshape(1, e))
        return out.reshape(e // 2)
    elif x.ndim == 2:
        return _merge_2d(x)
    elif x.ndim == 3:
        b, s, e = x.shape
        out = _merge_2d(x.reshape(b * s, e))
        return out.reshape(b, s, e // 2)
    else:
        raise ValueError(f"unsupported rank {x.ndim}")


if __name__ == "__main__":
    key = jax.random.PRNGKey(0)
    k1, k2, k3, k4, k5, k6, k7 = jax.random.split(key, 7)

    # Module-style small shapes (H=16, unaligned -> fallback slice path).
    x3 = jax.random.normal(k1, (2, 8, 32), dtype=jnp.float32)     # -> (2, 8, 16)
    x2 = jax.random.normal(k2, (8, 32), dtype=jnp.float32)        # -> (8, 16)
    x1 = jax.random.normal(k3, (64,), dtype=jnp.float32)          # -> (32,)

    # Lane-aligned small-H shapes (H=128 -> contiguous full-width slice path).
    x4 = jax.random.normal(k4, (4, 64, 256), dtype=jnp.float32)   # rows=256
    x5 = jax.random.normal(k5, (1536, 256), dtype=jnp.bfloat16)   # bf16 path

    # Large aligned H (H=512, >=2KiB/row f32 -> split-BlockSpec path).
    x6 = jax.random.normal(k6, (512, 1024), dtype=jnp.float32)    # -> (512, 512)

    # Multi-MiB input -> exercises multi-block row grid / v7x 4-way split.
    x7 = jax.random.normal(k7, (4096, 512), dtype=jnp.float32)    # -> (4096, 256)

    y3 = jax.block_until_ready(merge_layer(x3))
    y2 = jax.block_until_ready(merge_layer(x2))
    y1 = jax.block_until_ready(merge_layer((x1,)))  # tuple input path
    y4 = jax.block_until_ready(merge_layer(x4))
    y5 = jax.block_until_ready(merge_layer(x5))
    y6 = jax.block_until_ready(merge_layer(x6))
    y7 = jax.block_until_ready(merge_layer(x7))

    # Reference checks (plain JAX).
    assert jnp.allclose(y3, x3[..., :16] + x3[..., 16:], atol=1e-6)
    assert jnp.allclose(y2, x2[..., :16] + x2[..., 16:], atol=1e-6)
    assert jnp.allclose(y1, x1[:32] + x1[32:], atol=1e-6)
    assert jnp.allclose(y4, x4[..., :128] + x4[..., 128:], atol=1e-6)
    ref5 = (x5[:, :128].astype(jnp.float32) + x5[:, 128:].astype(jnp.float32))
    assert jnp.allclose(y5.astype(jnp.float32), ref5, atol=2e-2)
    assert jnp.allclose(y6, x6[:, :512] + x6[:, 512:], atol=1e-6)
    assert jnp.allclose(y7, x7[:, :256] + x7[:, 256:], atol=1e-6)
    assert y3.shape == (2, 8, 16) and y2.shape == (8, 16) and y1.shape == (32,)
    assert y4.shape == (4, 64, 128) and y5.shape == (1536, 128)
    assert y6.shape == (512, 512) and y7.shape == (4096, 256)
    assert y5.dtype == jnp.bfloat16

    print("KERNEL_OK")
</pallas_src>

<mosaic_0001>
module attributes {stable_mosaic.version = 11 : i64} {
  func.func @_merge_slice_kernel(%arg0: i32, %arg1: memref<16x32xf32, #tpu.memory_space<vmem>>, %arg2: memref<16x16xf32, #tpu.memory_space<vmem>>) attributes {dimension_semantics = [#tpu.dimension_semantics<parallel>], iteration_bounds = array<i64: 1>, scalar_prefetch = 0 : i64, scratch_operands = 0 : i64, tpu.core_type = #tpu.core_type<tc>, window_params = [{transform_indices = @transform_0, window_bounds = array<i64: 16, 32>}, {transform_indices = @transform_1, window_bounds = array<i64: 16, 16>}]} {
    %c0 = arith.constant 0 : index
    %c0_0 = arith.constant 0 : index
    %0 = vector.load %arg1[%c0, %c0_0] : memref<16x32xf32, #tpu.memory_space<vmem>>, vector<16x16xf32>
    %c0_1 = arith.constant 0 : index
    %c16 = arith.constant 16 : index
    %1 = vector.load %arg1[%c0_1, %c16] : memref<16x32xf32, #tpu.memory_space<vmem>>, vector<16x16xf32>
    %2 = arith.addf %0, %1 : vector<16x16xf32>
    %c0_2 = arith.constant 0 : index
    %c0_3 = arith.constant 0 : index
    %3 = vector.load %arg2[%c0_2, %c0_3] : memref<16x16xf32, #tpu.memory_space<vmem>>, vector<16x16xf32>
    tpu.vector_store %arg2[%c0_2, %c0_3], %2 {strides = array<i32>} : memref<16x16xf32, #tpu.memory_space<vmem>>, vector<16x16xf32>,
    return
  }
  func.func @transform_0(%arg0: i32) -> (i32, i32) {
    %c0_i32 = arith.constant 0 : i32
    %c0_i32_0 = arith.constant 0 : i32
    return %arg0, %c0_i32 : i32, i32
  }
  func.func @transform_1(%arg0: i32) -> (i32, i32) {
    %c0_i32 = arith.constant 0 : i32
    %c0_i32_0 = arith.constant 0 : i32
    return %arg0, %c0_i32 : i32, i32
  }
}

</mosaic_0001>

<llo_original>
// kernel: tpu_custom_call.1
$region0: #{tpu_custom_call.1}
  #allocation0 [shape = 'u32[]', space=smem, size = 0x4, offset = 0x4, fixed_abs, tag = 'smem constant byte address 0x4 - core index']
  #allocation1 [shape = 'u32[144,128]{1,0:T(1,128)}', space=vmem, size = 0x12000, scoped, tag = 'internal scratch']
  %s0 = inlined_call_operand.hbm [shape: f32[16,32], index: 0, kind: input, shape index: {}]
  %s1 = inlined_call_operand.hbm [shape: f32[16,16], index: 1, kind: output, shape index: {}]
  %s2 = sld [smem:[#allocation0]]
  $region18: #{tpu_custom_call.1} parent=0
    _
  %s4 = ssub.s32 1, %s2
  %s5 = scalar_select 0, %s4, %s2
  $region1: #{tpu_custom_call.1} parent=0
    #allocation2 [shape = 'u8[8192]{0}', space=vmem, size = 0x2000, scoped, tag = 'input window, operand 0, single buffered']
    #allocation3 [shape = 's32[1]{0}', space=sflag, size = 0x4, scoped, tag = 'scoped memory for tpu_custom_call.1']
    #allocation4 [shape = 's32[1]{0}', space=sflag, size = 0x4, scoped, tag = 'scoped memory for tpu_custom_call.1']
    #allocation5 [shape = 'u8[8192]{0}', space=vmem, size = 0x2000, scoped, tag = 'output window, operand 0, single buffered']
    %6 = vsyncpa [#allocation3], 0
    %7 = vsyncpa [#allocation4], 0
    // Predicated region
    $region2: #{tpu_custom_call.1} parent=1 // pred_check
      _
    $region3: #{tpu_custom_call.1} parent=1 // pred_check_branch
      %9 = sbr.rel (0) target = $region5
    $region4: #{tpu_custom_call.1} parent=1 // pred_region
      %s11 = ssub.s32 256, 256
      %12 = vsyncadd [#allocation3], %s11
      %s13 = sshll.u32 [#allocation2], 4
      %s14 = int_to_ptr.vmem [resolvable:$true] %s13
      %19 = dma.hbm_to_vmem [thread:$0]  %s0, 256, %s14, [#allocation3], 128, 128, 8
    $region5: #{tpu_custom_call.1} parent=1 // pred_fallthru
      _
    // Predicated region
    $region6: #{tpu_custom_call.1} parent=1 // pred_check
      _
    $region7: #{tpu_custom_call.1} parent=1 // pred_check_branch
      %21 = sbr.rel (0) target = $region9
    $region8: #{tpu_custom_call.1} parent=1 // pred_region
      %22 = dma.done [#allocation3], 256
    $region9: #{tpu_custom_call.1} parent=1 // pred_fallthru
      _
    %v23 = vld [vmem:[#allocation2] sm:$0xff]
    %v24 = vld [vmem:[#allocation2 + $0x8] sm:$0xff]
    %27 = vrot.lane.b32.xlu0 %v23, 112
    %v28 = vpop.permute.xlu0 %27
    %29 = vrot.lane.b32.xlu0 %v24, 112
    %v30 = vpop.permute.xlu0 %29
    %v33 = vadd.f32 %v23, %v28
    %v34 = vadd.f32 %v24, %v30
    %vm35 = vcmask 130048
    %36 = vst.msk [vmem:[#allocation5] sm:$0xff] %vm35, %v33
    %37 = vst.msk [vmem:[#allocation5 + $0x8] sm:$0xff] %vm35, %v34
    // Predicated region
    $region10: #{tpu_custom_call.1} parent=1 // pred_check
      _
    $region11: #{tpu_custom_call.1} parent=1 // pred_check_branch
      %39 = sbr.rel (0) target = $region13
    $region12: #{tpu_custom_call.1} parent=1 // pred_region
      %s41 = ssub.s32 256, 256
      %42 = vsyncadd [#allocation4], %s41
      %s43 = sshll.u32 [#allocation5], 4
      %s44 = int_to_ptr.vmem [resolvable:$true] %s43
      %49 = dma.vmem_to_hbm [thread:$0]  %s44, 256, %s1, [#allocation4], 128, 128, 8
    $region13: #{tpu_custom_call.1} parent=1 // pred_fallthru
      _
    // Predicated region
    $region14: #{tpu_custom_call.1} parent=1 // pred_check
      _
    $region15: #{tpu_custom_call.1} parent=1 // pred_check_branch
      %51 = sbr.rel (0) target = $region17
    $region16: #{tpu_custom_call.1} parent=1 // pred_region
      %52 = dma.done [#allocation4], 256
    $region17: #{tpu_custom_call.1} parent=1 // pred_fallthru
      _
    %53 = vsyncpa [#allocation3], 1
    %54 = vsyncpa [#allocation4], 1

</llo_original>
